<compile_context>
chip_gen: v5e
topology: v5e:2x2
jax: 0.10.0
libtpu: 0.0.40
codegen_flags: <defaults>
</compile_context>

<pallas_src>
import functools

import jax
import jax.numpy as jnp
from jax import lax
from jax.experimental import pallas as pl
from jax.experimental.pallas import tpu as pltpu

EPS = 1e-5  # nn.BatchNorm2d default eps


# ---------------------------------------------------------------------------
# Fused kernel: conv1 -> bn1 -> relu -> conv2 -> bn2 -> +x -> relu
# ---------------------------------------------------------------------------
def _fused_basic_block_kernel(x_ref, mu_ref, md_ref,
                              t1_ref, g1_ref, b1_ref,
                              t2_ref, g2_ref, b2_ref,
                              out_ref, *, w_dim, c_dim):
    """Everything stays in VMEM; activations are lane-dense (N*H, W*C) f32."""
    rows, wc = out_ref.shape
    inv_count = 1.0 / float(rows * w_dim)              # 1 / (N*H*W)

    mask_up = mu_ref[...]                              # (rows, 1): row h-1 exists
    mask_dn = md_ref[...]                              # (rows, 1): row h+1 exists
    zero_row = jnp.zeros((1, wc), jnp.float32)

    def conv3x3(act, t_ref):
        # H halo: sublane-shifted copies (concat with one zero row) zeroed at
        # batch boundaries.  W halo: folded into the block-Toeplitz weights.
        # Single bf16 MXU matmul with K = 3*W*C, f32 accumulation.
        up = jnp.concatenate([zero_row, act[:rows - 1]], axis=0) * mask_up
        dn = jnp.concatenate([act[1:], zero_row], axis=0) * mask_dn
        lhs = jnp.concatenate([up, act, dn], axis=1).astype(jnp.bfloat16)
        return jnp.dot(lhs, t_ref[...], preferred_element_type=jnp.float32)

    def lane_group_allreduce(v):
        # v: (2, W*C) holding [sum; sum-of-squares] per (w, c) lane.  Sum the
        # W groups of C lanes and broadcast the per-channel totals back to
        # every group.  Log-tree of lane rolls (XLU slot) when W is a power of
        # two, else a linear chain.  Exact f32 either way.
        span = w_dim * c_dim
        if w_dim & (w_dim - 1) == 0:
            shift = c_dim
            while shift < span:
                v = v + pltpu.roll(v, shift, axis=1)
                shift *= 2
            return v
        total = v
        for k in range(1, w_dim):
            total = total + pltpu.roll(v, k * c_dim, axis=1)
        return total

    def bn_relu(y, gamma, beta, residual=None):
        # Training-mode batch statistics, one pass, all stats math in f32.
        s = jnp.sum(y, axis=0, keepdims=True)
        ss = jnp.sum(y * y, axis=0, keepdims=True)
        tot = lane_group_allreduce(jnp.concatenate([s, ss], axis=0)) * inv_count
        mean = tot[0:1, :]
        var = jnp.maximum(tot[1:2, :] - mean * mean, 0.0)   # clamp cancellation
        scale = gamma * lax.rsqrt(var + EPS)                 # rsqrt -> EUP
        shift = beta - mean * scale
        z = y * scale + shift
        if residual is not None:
            z = z + residual
        return jnp.maximum(z, 0.0)

    x = x_ref[...]                                           # (rows, W*C) f32
    h = bn_relu(conv3x3(x, t1_ref), g1_ref[...], b1_ref[...])
    out_ref[...] = bn_relu(conv3x3(h, t2_ref), g2_ref[...], b2_ref[...],
                           residual=x)


# ---------------------------------------------------------------------------
# One-time parameter preparation (hoisted out of the per-step path)
# ---------------------------------------------------------------------------
def _toeplitz_conv_weights(w_oihw, w_dim):
    """OIHW 3x3 weights -> (3*W*Cin, W*Cout) bf16 stacked block-Toeplitz matrix.
    Block dy (= kh) rows: T[dy][w_in*Cin + ci, w_out*Cout + co]
      = w[co, ci, dy, w_in - w_out + 1] (zero outside the 3-tap band), so a
    (rows, W*Cin) slab holding x[h+dy-1] times block dy performs the kw/ci part
    of the conv including zero padding along W."""
    wt = jnp.transpose(w_oihw, (2, 3, 1, 0)).astype(jnp.float32)  # (kh,kw,Ci,Co)
    cin, cout = wt.shape[2], wt.shape[3]
    idx = jnp.arange(w_dim)
    band = (idx[None, :, None] - idx[None, None, :] + 1
            == jnp.arange(3)[:, None, None]).astype(jnp.float32)  # (3, Win, Wout)
    t = jnp.einsum("xJw,yxio->yJiwo", band, wt)   # (kh, Win, Cin, Wout, Cout)
    return t.reshape(3 * w_dim * cin, w_dim * cout).astype(jnp.bfloat16)


def prepare_block_params(params, img_w):
    """Build kernel-side constants ONCE (at module init / weight update)."""
    c = params["gamma1"].shape[0]

    def tile_param(p):                            # (C,) -> (1, W*C) lane layout
        return jnp.tile(p.astype(jnp.float32), img_w).reshape(1, img_w * c)

    return dict(
        t1=_toeplitz_conv_weights(params["w1"], img_w),
        t2=_toeplitz_conv_weights(params["w2"], img_w),
        g1=tile_param(params["gamma1"]), b1=tile_param(params["beta1"]),
        g2=tile_param(params["gamma2"]), b2=tile_param(params["beta2"]),
    )


# ---------------------------------------------------------------------------
# Fused forward on the lane-dense layout (+ thin NCHW adapter)
# ---------------------------------------------------------------------------
def basic_block_apply(x_dense, prep, *, img_h, img_w, channels):
    """x_dense: (N*H, W*C) f32 lane-dense activations -> same-shape output."""
    rows, wc = x_dense.shape
    assert wc == img_w * channels and wc % 128 == 0 and rows % 8 == 0, (
        "lane-dense layout requires W*C to be a multiple of 128 and N*H a "
        "multiple of 8")

    # Batch-boundary halo masks; static shapes => folded to constants under jit.
    r = jnp.arange(rows, dtype=jnp.int32) % img_h
    mask_up = (r != 0).astype(jnp.float32).reshape(rows, 1)
    mask_dn = (r != img_h - 1).astype(jnp.float32).reshape(rows, 1)

    kernel = functools.partial(_fused_basic_block_kernel,
                               w_dim=img_w, c_dim=channels)
    vmem = pl.BlockSpec(memory_space=pltpu.MemorySpace.VMEM)
    return pl.pallas_call(
        kernel,
        out_shape=jax.ShapeDtypeStruct((rows, wc), jnp.float32),
        in_specs=[vmem] * 9,
        out_specs=vmem,
    )(x_dense, mask_up, mask_dn,
      prep["t1"], prep["g1"], prep["b1"],
      prep["t2"], prep["g2"], prep["b2"])


def nchw_to_dense(x_nchw):
    n, c, h, w = x_nchw.shape
    return jnp.transpose(x_nchw, (0, 2, 3, 1)).reshape(n * h, w * c)


def dense_to_nchw(x_dense, n, c, h, w):
    return jnp.transpose(x_dense.reshape(n, h, w, c), (0, 3, 1, 2))


def basic_block_forward(x_nchw, prep):
    """NCHW adapter for parity with the PyTorch module.  Callers that already
    carry NHWC activations should use basic_block_apply directly and skip
    these boundary transposes."""
    n, c, h, w = x_nchw.shape
    out = basic_block_apply(nchw_to_dense(x_nchw).astype(jnp.float32), prep,
                            img_h=h, img_w=w, channels=c)
    return dense_to_nchw(out, n, c, h, w)


# ---------------------------------------------------------------------------
# Pure-JAX reference (NCHW) for the correctness check
# ---------------------------------------------------------------------------
def reference_forward(x, params):
    def conv(y, wgt):
        return lax.conv_general_dilated(
            y, wgt, (1, 1), ((1, 1), (1, 1)),
            dimension_numbers=("NCHW", "OIHW", "NCHW"))

    def bn(y, g, b):
        mean = jnp.mean(y, axis=(0, 2, 3), keepdims=True)
        var = jnp.mean(jnp.square(y - mean), axis=(0, 2, 3), keepdims=True)
        return ((y - mean) * lax.rsqrt(var + EPS) * g.reshape(1, -1, 1, 1)
                + b.reshape(1, -1, 1, 1))

    h = jax.nn.relu(bn(conv(x, params["w1"]), params["gamma1"], params["beta1"]))
    o = bn(conv(h, params["w2"]), params["gamma2"], params["beta2"]) + x
    return jax.nn.relu(o)


if __name__ == "__main__":
    N, C, H, W = 2, 8, 16, 16            # inplanes == planes == 8; W*C = 128 lanes
    key = jax.random.PRNGKey(0)
    k1, k2, k3, k4, k5, k6, k7 = jax.random.split(key, 7)

    x = jax.random.normal(k1, (N, C, H, W), jnp.float32)
    params = dict(
        w1=0.1 * jax.random.normal(k2, (C, C, 3, 3), jnp.float32),
        w2=0.1 * jax.random.normal(k3, (C, C, 3, 3), jnp.float32),
        gamma1=1.0 + 0.1 * jax.random.normal(k4, (C,), jnp.float32),
        beta1=0.1 * jax.random.normal(k5, (C,), jnp.float32),
        gamma2=1.0 + 0.1 * jax.random.normal(k6, (C,), jnp.float32),
        beta2=0.1 * jax.random.normal(k7, (C,), jnp.float32),
    )

    # Hoisted once (module init): bf16 Toeplitz weights + tiled BN params.
    prep = prepare_block_params(params, W)

    # Steady-state step: only the fused pallas_call is inside this jit — no
    # weight rebuild, no layout transposes.
    fwd = jax.jit(functools.partial(basic_block_apply,
                                    img_h=H, img_w=W, channels=C))
    x_dense = nchw_to_dense(x)
    out_dense = jax.block_until_ready(fwd(x_dense, prep))

    ref_dense = nchw_to_dense(reference_forward(x, params))
    assert out_dense.shape == (N * H, W * C)
    max_err = float(jnp.max(jnp.abs(out_dense - ref_dense)))
    # bf16 MXU operands vs. the f32 XLA reference conv: rounding-level error
    # only; a real tap/Toeplitz/BN/mask bug would show up as O(1).
    if max_err < 5e-2:
        print("KERNEL_OK")
    else:
        print(f"MAX_ERR={max_err}")
</pallas_src>

<mosaic_0001>
module attributes {stable_mosaic.version = 11 : i64} {
  func.func @_fused_basic_block_kernel(%arg0: memref<32x128xf32, #tpu.memory_space<vmem>>, %arg1: memref<32x1xf32, #tpu.memory_space<vmem>>, %arg2: memref<32x1xf32, #tpu.memory_space<vmem>>, %arg3: memref<384x128xbf16, #tpu.memory_space<vmem>>, %arg4: memref<1x128xf32, #tpu.memory_space<vmem>>, %arg5: memref<1x128xf32, #tpu.memory_space<vmem>>, %arg6: memref<384x128xbf16, #tpu.memory_space<vmem>>, %arg7: memref<1x128xf32, #tpu.memory_space<vmem>>, %arg8: memref<1x128xf32, #tpu.memory_space<vmem>>, %arg9: memref<32x128xf32, #tpu.memory_space<vmem>>) attributes {dimension_semantics = [], scalar_prefetch = 0 : i64, scratch_operands = 0 : i64, tpu.core_type = #tpu.core_type<tc>} {
    %c0 = arith.constant 0 : index
    %c0_0 = arith.constant 0 : index
    %0 = vector.load %arg1[%c0, %c0_0] : memref<32x1xf32, #tpu.memory_space<vmem>>, vector<32x1xf32>
    %c0_1 = arith.constant 0 : index
    %c0_2 = arith.constant 0 : index
    %1 = vector.load %arg2[%c0_1, %c0_2] : memref<32x1xf32, #tpu.memory_space<vmem>>, vector<32x1xf32>
    %cst = arith.constant 0.000000e+00 : f32
    %2 = vector.broadcast %cst : f32 to vector<1x128xf32>
    %c0_3 = arith.constant 0 : index
    %c0_4 = arith.constant 0 : index
    %3 = vector.load %arg0[%c0_3, %c0_4] : memref<32x128xf32, #tpu.memory_space<vmem>>, vector<32x128xf32>
    %4 = vector.extract_strided_slice %3 {offsets = [0, 0], sizes = [31, 128], strides = [1, 1]} : vector<32x128xf32> to vector<31x128xf32>
    %5 = tpu.concatenate %2, %4 in 0 : vector<1x128xf32>, vector<31x128xf32> -> vector<32x128xf32>
    %6 = vector.broadcast %0 : vector<32x1xf32> to vector<32x128xf32>
    %7 = arith.mulf %5, %6 : vector<32x128xf32>
    %8 = vector.extract_strided_slice %3 {offsets = [1, 0], sizes = [31, 128], strides = [1, 1]} : vector<32x128xf32> to vector<31x128xf32>
    %9 = tpu.concatenate %8, %2 in 0 : vector<31x128xf32>, vector<1x128xf32> -> vector<32x128xf32>
    %10 = vector.broadcast %1 : vector<32x1xf32> to vector<32x128xf32>
    %11 = arith.mulf %9, %10 : vector<32x128xf32>
    %12 = tpu.concatenate %7, %3, %11 in 1 : vector<32x128xf32>, vector<32x128xf32>, vector<32x128xf32> -> vector<32x384xf32>
    %13 = arith.truncf %12 : vector<32x384xf32> to vector<32x384xbf16>
    %c0_5 = arith.constant 0 : index
    %c0_6 = arith.constant 0 : index
    %14 = vector.load %arg3[%c0_5, %c0_6] : memref<384x128xbf16, #tpu.memory_space<vmem>>, vector<384x128xbf16>
    %cst_7 = arith.constant dense<0.000000e+00> : vector<32x128xf32>
    %15 = tpu.matmul %13, %14, %cst_7 {dimension_numbers = #tpu.dot_dimension_numbers<[1], [0], [0], [1], [0, 0, 1, 1], [], []>} : vector<32x384xbf16>, vector<384x128xbf16>, vector<32x128xf32> -> vector<32x128xf32>
    %c0_8 = arith.constant 0 : index
    %c0_9 = arith.constant 0 : index
    %16 = vector.load %arg4[%c0_8, %c0_9] : memref<1x128xf32, #tpu.memory_space<vmem>>, vector<1x128xf32>
    %c0_10 = arith.constant 0 : index
    %c0_11 = arith.constant 0 : index
    %17 = vector.load %arg5[%c0_10, %c0_11] : memref<1x128xf32, #tpu.memory_space<vmem>>, vector<1x128xf32>
    %cst_12 = arith.constant dense<0.000000e+00> : vector<128xf32>
    %18 = vector.multi_reduction <add>, %15, %cst_12 [0] : vector<32x128xf32> to vector<128xf32>
    %19 = vector.shape_cast %18 : vector<128xf32> to vector<1x128xf32>
    %20 = arith.mulf %15, %15 : vector<32x128xf32>
    %cst_13 = arith.constant dense<0.000000e+00> : vector<128xf32>
    %21 = vector.multi_reduction <add>, %20, %cst_13 [0] : vector<32x128xf32> to vector<128xf32>
    %22 = vector.shape_cast %21 : vector<128xf32> to vector<1x128xf32>
    %23 = tpu.concatenate %19, %22 in 0 : vector<1x128xf32>, vector<1x128xf32> -> vector<2x128xf32>
    %c8_i32 = arith.constant 8 : i32
    %24 = tpu.dynamic_rotate %23 by %c8_i32 dim 1 : vector<2x128xf32>, i32 -> vector<2x128xf32>
    %25 = arith.addf %23, %24 : vector<2x128xf32>
    %c16_i32 = arith.constant 16 : i32
    %26 = tpu.dynamic_rotate %25 by %c16_i32 dim 1 : vector<2x128xf32>, i32 -> vector<2x128xf32>
    %27 = arith.addf %25, %26 : vector<2x128xf32>
    %c32_i32 = arith.constant 32 : i32
    %28 = tpu.dynamic_rotate %27 by %c32_i32 dim 1 : vector<2x128xf32>, i32 -> vector<2x128xf32>
    %29 = arith.addf %27, %28 : vector<2x128xf32>
    %c64_i32 = arith.constant 64 : i32
    %30 = tpu.dynamic_rotate %29 by %c64_i32 dim 1 : vector<2x128xf32>, i32 -> vector<2x128xf32>
    %31 = arith.addf %29, %30 : vector<2x128xf32>
    %cst_14 = arith.constant 0.001953125 : f32
    %32 = vector.broadcast %cst_14 : f32 to vector<2x128xf32>
    %33 = arith.mulf %31, %32 : vector<2x128xf32>
    %34 = vector.extract_strided_slice %33 {offsets = [0, 0], sizes = [1, 128], strides = [1, 1]} : vector<2x128xf32> to vector<1x128xf32>
    %35 = vector.extract_strided_slice %33 {offsets = [1, 0], sizes = [1, 128], strides = [1, 1]} : vector<2x128xf32> to vector<1x128xf32>
    %36 = arith.mulf %34, %34 : vector<1x128xf32>
    %37 = arith.subf %35, %36 : vector<1x128xf32>
    %cst_15 = arith.constant 0.000000e+00 : f32
    %38 = vector.broadcast %cst_15 : f32 to vector<1x128xf32>
    %39 = arith.maximumf %37, %38 : vector<1x128xf32>
    %cst_16 = arith.constant 9.99999974E-6 : f32
    %40 = vector.broadcast %cst_16 : f32 to vector<1x128xf32>
    %41 = arith.addf %39, %40 : vector<1x128xf32>
    %42 = math.rsqrt %41 : vector<1x128xf32>
    %43 = arith.mulf %16, %42 : vector<1x128xf32>
    %44 = arith.mulf %34, %43 : vector<1x128xf32>
    %45 = arith.subf %17, %44 : vector<1x128xf32>
    %46 = vector.broadcast %43 : vector<1x128xf32> to vector<32x128xf32>
    %47 = arith.mulf %15, %46 : vector<32x128xf32>
    %48 = vector.broadcast %45 : vector<1x128xf32> to vector<32x128xf32>
    %49 = arith.addf %47, %48 : vector<32x128xf32>
    %cst_17 = arith.constant 0.000000e+00 : f32
    %50 = vector.broadcast %cst_17 : f32 to vector<32x128xf32>
    %51 = arith.maximumf %49, %50 : vector<32x128xf32>
    %52 = vector.extract_strided_slice %51 {offsets = [0, 0], sizes = [31, 128], strides = [1, 1]} : vector<32x128xf32> to vector<31x128xf32>
    %53 = tpu.concatenate %2, %52 in 0 : vector<1x128xf32>, vector<31x128xf32> -> vector<32x128xf32>
    %54 = vector.broadcast %0 : vector<32x1xf32> to vector<32x128xf32>
    %55 = arith.mulf %53, %54 : vector<32x128xf32>
    %56 = vector.extract_strided_slice %51 {offsets = [1, 0], sizes = [31, 128], strides = [1, 1]} : vector<32x128xf32> to vector<31x128xf32>
    %57 = tpu.concatenate %56, %2 in 0 : vector<31x128xf32>, vector<1x128xf32> -> vector<32x128xf32>
    %58 = vector.broadcast %1 : vector<32x1xf32> to vector<32x128xf32>
    %59 = arith.mulf %57, %58 : vector<32x128xf32>
    %60 = tpu.concatenate %55, %51, %59 in 1 : vector<32x128xf32>, vector<32x128xf32>, vector<32x128xf32> -> vector<32x384xf32>
    %61 = arith.truncf %60 : vector<32x384xf32> to vector<32x384xbf16>
    %c0_18 = arith.constant 0 : index
    %c0_19 = arith.constant 0 : index
    %62 = vector.load %arg6[%c0_18, %c0_19] : memref<384x128xbf16, #tpu.memory_space<vmem>>, vector<384x128xbf16>
    %cst_20 = arith.constant dense<0.000000e+00> : vector<32x128xf32>
    %63 = tpu.matmul %61, %62, %cst_20 {dimension_numbers = #tpu.dot_dimension_numbers<[1], [0], [0], [1], [0, 0, 1, 1], [], []>} : vector<32x384xbf16>, vector<384x128xbf16>, vector<32x128xf32> -> vector<32x128xf32>
    %c0_21 = arith.constant 0 : index
    %c0_22 = arith.constant 0 : index
    %64 = vector.load %arg7[%c0_21, %c0_22] : memref<1x128xf32, #tpu.memory_space<vmem>>, vector<1x128xf32>
    %c0_23 = arith.constant 0 : index
    %c0_24 = arith.constant 0 : index
    %65 = vector.load %arg8[%c0_23, %c0_24] : memref<1x128xf32, #tpu.memory_space<vmem>>, vector<1x128xf32>
    %cst_25 = arith.constant dense<0.000000e+00> : vector<128xf32>
    %66 = vector.multi_reduction <add>, %63, %cst_25 [0] : vector<32x128xf32> to vector<128xf32>
    %67 = vector.shape_cast %66 : vector<128xf32> to vector<1x128xf32>
    %68 = arith.mulf %63, %63 : vector<32x128xf32>
    %cst_26 = arith.constant dense<0.000000e+00> : vector<128xf32>
    %69 = vector.multi_reduction <add>, %68, %cst_26 [0] : vector<32x128xf32> to vector<128xf32>
    %70 = vector.shape_cast %69 : vector<128xf32> to vector<1x128xf32>
    %71 = tpu.concatenate %67, %70 in 0 : vector<1x128xf32>, vector<1x128xf32> -> vector<2x128xf32>
    %c8_i32_27 = arith.constant 8 : i32
    %72 = tpu.dynamic_rotate %71 by %c8_i32_27 dim 1 : vector<2x128xf32>, i32 -> vector<2x128xf32>
    %73 = arith.addf %71, %72 : vector<2x128xf32>
    %c16_i32_28 = arith.constant 16 : i32
    %74 = tpu.dynamic_rotate %73 by %c16_i32_28 dim 1 : vector<2x128xf32>, i32 -> vector<2x128xf32>
    %75 = arith.addf %73, %74 : vector<2x128xf32>
    %c32_i32_29 = arith.constant 32 : i32
    %76 = tpu.dynamic_rotate %75 by %c32_i32_29 dim 1 : vector<2x128xf32>, i32 -> vector<2x128xf32>
    %77 = arith.addf %75, %76 : vector<2x128xf32>
    %c64_i32_30 = arith.constant 64 : i32
    %78 = tpu.dynamic_rotate %77 by %c64_i32_30 dim 1 : vector<2x128xf32>, i32 -> vector<2x128xf32>
    %79 = arith.addf %77, %78 : vector<2x128xf32>
    %cst_31 = arith.constant 0.001953125 : f32
    %80 = vector.broadcast %cst_31 : f32 to vector<2x128xf32>
    %81 = arith.mulf %79, %80 : vector<2x128xf32>
    %82 = vector.extract_strided_slice %81 {offsets = [0, 0], sizes = [1, 128], strides = [1, 1]} : vector<2x128xf32> to vector<1x128xf32>
    %83 = vector.extract_strided_slice %81 {offsets = [1, 0], sizes = [1, 128], strides = [1, 1]} : vector<2x128xf32> to vector<1x128xf32>
    %84 = arith.mulf %82, %82 : vector<1x128xf32>
    %85 = arith.subf %83, %84 : vector<1x128xf32>
    %cst_32 = arith.constant 0.000000e+00 : f32
    %86 = vector.broadcast %cst_32 : f32 to vector<1x128xf32>
    %87 = arith.maximumf %85, %86 : vector<1x128xf32>
    %cst_33 = arith.constant 9.99999974E-6 : f32
    %88 = vector.broadcast %cst_33 : f32 to vector<1x128xf32>
    %89 = arith.addf %87, %88 : vector<1x128xf32>
    %90 = math.rsqrt %89 : vector<1x128xf32>
    %91 = arith.mulf %64, %90 : vector<1x128xf32>
    %92 = arith.mulf %82, %91 : vector<1x128xf32>
    %93 = arith.subf %65, %92 : vector<1x128xf32>
    %94 = vector.broadcast %91 : vector<1x128xf32> to vector<32x128xf32>
    %95 = arith.mulf %63, %94 : vector<32x128xf32>
    %96 = vector.broadcast %93 : vector<1x128xf32> to vector<32x128xf32>
    %97 = arith.addf %95, %96 : vector<32x128xf32>
    %98 = arith.addf %97, %3 : vector<32x128xf32>
    %cst_34 = arith.constant 0.000000e+00 : f32
    %99 = vector.broadcast %cst_34 : f32 to vector<32x128xf32>
    %100 = arith.maximumf %98, %99 : vector<32x128xf32>
    %c0_35 = arith.constant 0 : index
    %c0_36 = arith.constant 0 : index
    %101 = vector.load %arg9[%c0_35, %c0_36] : memref<32x128xf32, #tpu.memory_space<vmem>>, vector<32x128xf32>
    tpu.vector_store %arg9[%c0_35, %c0_36], %100 {strides = array<i32>} : memref<32x128xf32, #tpu.memory_space<vmem>>, vector<32x128xf32>,
    return
  }
}

</mosaic_0001>

<llo_original>
// kernel: basic_block_apply.1
$region0: #{basic_block_apply.1}
  #allocation0 [shape = 'u32[]', space=smem, size = 0x4, offset = 0x4, fixed_abs, tag = 'smem constant byte address 0x4 - core index']
  #allocation1 [shape = 'u32[72,128]{1,0:T(1,128)}', space=vmem, size = 0x9000, scoped, tag = 'internal scratch']
  %s0 = inlined_call_operand.vmem [shape: f32[32,128], index: 0, kind: input, shape index: {}]
  %s1 = inlined_call_operand.vmem [shape: f32[32,1], index: 1, kind: input, shape index: {}]
  %s2 = inlined_call_operand.vmem [shape: f32[32,1], index: 2, kind: input, shape index: {}]
  %s3 = inlined_call_operand.hbm [shape: bf16[384,128], index: 3, kind: input, shape index: {}]
  %s4 = inlined_call_operand.vmem [shape: f32[1,128], index: 4, kind: input, shape index: {}]
  %s5 = inlined_call_operand.vmem [shape: f32[1,128], index: 5, kind: input, shape index: {}]
  %s6 = inlined_call_operand.hbm [shape: bf16[384,128], index: 6, kind: input, shape index: {}]
  %s7 = inlined_call_operand.vmem [shape: f32[1,128], index: 7, kind: input, shape index: {}]
  %s8 = inlined_call_operand.vmem [shape: f32[1,128], index: 8, kind: input, shape index: {}]
  %s9 = inlined_call_operand.hbm [shape: f32[32,128], index: 9, kind: output, shape index: {}]
  %s10 = sld [smem:[#allocation0]]
  $region54: #{basic_block_apply.1} parent=0
    _
  %s12 = ssub.s32 1, %s10
  %s13 = scalar_select 0, %s12, %s10
  $region1: #{basic_block_apply.1} parent=0
    #allocation2 [shape = 'u8[98304]{0}', space=vmem, size = 0x18000, scoped, tag = 'input window, operand 3, single buffered']
    #allocation3 [shape = 's32[1]{0}', space=sflag, size = 0x4, scoped, tag = 'scoped memory for basic_block_apply.1']
    #allocation4 [shape = 's32[1]{0}', space=sflag, size = 0x4, scoped, tag = 'scoped memory for basic_block_apply.1']
    #allocation5 [shape = 'u8[98304]{0}', space=vmem, size = 0x18000, scoped, tag = 'input window, operand 6, single buffered']
    #allocation6 [shape = 's32[1]{0}', space=sflag, size = 0x4, scoped, tag = 'scoped memory for basic_block_apply.1']
    #allocation7 [shape = 'u8[16384]{0}', space=vmem, size = 0x4000, scoped, tag = 'output window, operand 0, single buffered']
    %14 = vsyncpa [#allocation3], 0
    %15 = vsyncpa [#allocation6], 0
    %16 = vsyncpa [#allocation4], 0
    // Predicated region
    $region2: #{basic_block_apply.1} parent=1 // pred_check
      _
    $region3: #{basic_block_apply.1} parent=1 // pred_check_branch
      %18 = sbr.rel (0) target = $region5
    $region4: #{basic_block_apply.1} parent=1 // pred_region
      _
    $region5: #{basic_block_apply.1} parent=1 // pred_fallthru
      _
    // Predicated region
    $region6: #{basic_block_apply.1} parent=1 // pred_check
      _
    $region7: #{basic_block_apply.1} parent=1 // pred_check_branch
      %20 = sbr.rel (0) target = $region9
    $region8: #{basic_block_apply.1} parent=1 // pred_region
      _
    $region9: #{basic_block_apply.1} parent=1 // pred_fallthru
      _
    // Predicated region
    $region10: #{basic_block_apply.1} parent=1 // pred_check
      _
    $region11: #{basic_block_apply.1} parent=1 // pred_check_branch
      %22 = sbr.rel (0) target = $region13
    $region12: #{basic_block_apply.1} parent=1 // pred_region
      _
    $region13: #{basic_block_apply.1} parent=1 // pred_fallthru
      _
    // Predicated region
    $region14: #{basic_block_apply.1} parent=1 // pred_check
      _
    $region15: #{basic_block_apply.1} parent=1 // pred_check_branch
      %24 = sbr.rel (0) target = $region17
    $region16: #{basic_block_apply.1} parent=1 // pred_region
      %26 = vsyncadd [#allocation3], 0
      %s27 = sshll.u32 %s3, 4
      %s28 = int_to_ptr.hbm [resolvable:$true] %s27
      %s29 = sshll.u32 [#allocation2], 4
      %s30 = int_to_ptr.vmem [resolvable:$true] %s29
      %35 = dma.hbm_to_vmem [thread:$0]  %s28, 3072, %s30, [#allocation3], 64, 64, 4
    $region17: #{basic_block_apply.1} parent=1 // pred_fallthru
      _
    // Predicated region
    $region18: #{basic_block_apply.1} parent=1 // pred_check
      _
    $region19: #{basic_block_apply.1} parent=1 // pred_check_branch
      %37 = sbr.rel (0) target = $region21
    $region20: #{basic_block_apply.1} parent=1 // pred_region
      _
    $region21: #{basic_block_apply.1} parent=1 // pred_fallthru
      _
    // Predicated region
    $region22: #{basic_block_apply.1} parent=1 // pred_check
      _
    $region23: #{basic_block_apply.1} parent=1 // pred_check_branch
      %39 = sbr.rel (0) target = $region25
    $region24: #{basic_block_apply.1} parent=1 // pred_region
      _
    $region25: #{basic_block_apply.1} parent=1 // pred_fallthru
      _
    // Predicated region
    $region26: #{basic_block_apply.1} parent=1 // pred_check
      _
    $region27: #{basic_block_apply.1} parent=1 // pred_check_branch
      %41 = sbr.rel (0) target = $region29
    $region28: #{basic_block_apply.1} parent=1 // pred_region
      %43 = vsyncadd [#allocation6], 0
      %s44 = sshll.u32 %s6, 4
      %s45 = int_to_ptr.hbm [resolvable:$true] %s44
      %s46 = sshll.u32 [#allocation5], 4
      %s47 = int_to_ptr.vmem [resolvable:$true] %s46
      %52 = dma.hbm_to_vmem [thread:$0]  %s45, 3072, %s47, [#allocation6], 64, 64, 4
    $region29: #{basic_block_apply.1} parent=1 // pred_fallthru
      _
    // Predicated region
    $region30: #{basic_block_apply.1} parent=1 // pred_check
      _
    $region31: #{basic_block_apply.1} parent=1 // pred_check_branch
      %54 = sbr.rel (0) target = $region33
    $region32: #{basic_block_apply.1} parent=1 // pred_region
      _
    $region33: #{basic_block_apply.1} parent=1 // pred_fallthru
      _
    // Predicated region
    $region34: #{basic_block_apply.1} parent=1 // pred_check
      _
    $region35: #{basic_block_apply.1} parent=1 // pred_check_branch
      %56 = sbr.rel (0) target = $region37
    $region36: #{basic_block_apply.1} parent=1 // pred_region
      _
    $region37: #{basic_block_apply.1} parent=1 // pred_fallthru
      _
    // Predicated region
    $region38: #{basic_block_apply.1} parent=1 // pred_check
      _
    $region39: #{basic_block_apply.1} parent=1 // pred_check_branch
      %58 = sbr.rel (0) target = $region41
    $region40: #{basic_block_apply.1} parent=1 // pred_region
      %60 = dma.done [#allocation3], 3072
    $region41: #{basic_block_apply.1} parent=1 // pred_fallthru
      _
    // Predicated region
    $region42: #{basic_block_apply.1} parent=1 // pred_check
      _
    $region43: #{basic_block_apply.1} parent=1 // pred_check_branch
      %62 = sbr.rel (0) target = $region45
    $region44: #{basic_block_apply.1} parent=1 // pred_region
      %64 = dma.done [#allocation6], 3072
    $region45: #{basic_block_apply.1} parent=1 // pred_fallthru
      _
    %v65 = vld [vmem:[%s1] sm:$0xff]
    %v66 = vld [vmem:[%s1 + $0x8] sm:$0xff]
    %v67 = vld [vmem:[%s1 + $0x10] sm:$0xff]
    %v68 = vld [vmem:[%s1 + $0x18] sm:$0xff]
    %v69 = vld [vmem:[%s2] sm:$0xff]
    %v70 = vld [vmem:[%s2 + $0x8] sm:$0xff]
    %v71 = vld [vmem:[%s2 + $0x10] sm:$0xff]
    %v72 = vld [vmem:[%s2 + $0x18] sm:$0xff]
    %v73 = vld [vmem:[%s0] sm:$0xff]
    %v74 = vld [vmem:[%s0 + $0x8] sm:$0xff]
    %v75 = vld [vmem:[%s0 + $0x10] sm:$0xff]
    %v76 = vld [vmem:[%s0 + $0x18] sm:$0xff]
    %vm81 = vcmask 1040384
    %v82 = vrot.slane %v73, 7
    %v83 = vrot.slane %v74, 7
    %v84 = vsel %vm81, %v82, %v83
    %v85 = vrot.slane %v75, 7
    %v86 = vsel %vm81, %v83, %v85
    %v87 = vrot.slane %v76, 7
    %v88 = vsel %vm81, %v85, %v87
    %v93 = vsel %vm81, 0.0, %v82
    %95 = vset.pattern.permute.xlu0 0
    %96 = vperm.xlu0 %95, %v65
    %v97 = vpop.permute.xlu0 %96
    %100 = vset.pattern.permute.xlu0 0
    %101 = vperm.xlu0 %100, %v66
    %v102 = vpop.permute.xlu0 %101
    %105 = vset.pattern.permute.xlu0 0
    %106 = vperm.xlu0 %105, %v67
    %v107 = vpop.permute.xlu0 %106
    %110 = vset.pattern.permute.xlu0 0
    %111 = vperm.xlu0 %110, %v68
    %v112 = vpop.permute.xlu0 %111
    %v114 = vmul.f32 %v93, %v97
    %v115 = vmul.f32 %v84, %v102
    %v116 = vmul.f32 %v86, %v107
    %v117 = vmul.f32 %v88, %v112
    %vm118 = vcmask 1046528
    %v119 = vrot.slane %v73, 1
    %v120 = vrot.slane %v74, 1
    %v121 = vsel %vm118, %v119, %v120
    %v122 = vrot.slane %v75, 1
    %v123 = vsel %vm118, %v120, %v122
    %v124 = vrot.slane %v76, 1
    %v125 = vsel %vm118, %v122, %v124
    %v130 = vsel %vm118, %v124, 0.0
    %132 = vset.pattern.permute.xlu0 0
    %133 = vperm.xlu0 %132, %v69
    %v134 = vpop.permute.xlu0 %133
    %137 = vset.pattern.permute.xlu0 0
    %138 = vperm.xlu0 %137, %v70
    %v139 = vpop.permute.xlu0 %138
    %142 = vset.pattern.permute.xlu0 0
    %143 = vperm.xlu0 %142, %v71
    %v144 = vpop.permute.xlu0 %143
    %147 = vset.pattern.permute.xlu0 0
    %148 = vperm.xlu0 %147, %v72
    %v149 = vpop.permute.xlu0 %148
    %v151 = vmul.f32 %v121, %v134
    %v152 = vmul.f32 %v123, %v139
    %v153 = vmul.f32 %v125, %v144
    %v154 = vmul.f32 %v130, %v149
    %v155 = vpack.c.bf16 %v115, %v114
    %v156 = vpack.c.bf16 %v74, %v73
    %v157 = vpack.c.bf16 %v152, %v151
    %v158 = vpack.c.bf16 %v117, %v116
    %v159 = vpack.c.bf16 %v76, %v75
    %v160 = vpack.c.bf16 %v154, %v153
    %v161 = vld [vmem:[#allocation2] sm:$0xf]
    %v162 = vld [vmem:[#allocation2 + $0x4] sm:$0xf]
    %v163 = vld [vmem:[#allocation2 + $0x8] sm:$0xf]
    %v164 = vld [vmem:[#allocation2 + $0xc] sm:$0xf]
    %v165 = vld [vmem:[#allocation2 + $0x10] sm:$0xf]
    %v166 = vld [vmem:[#allocation2 + $0x14] sm:$0xf]
    %v167 = vld [vmem:[#allocation2 + $0x18] sm:$0xf]
    %v168 = vld [vmem:[#allocation2 + $0x1c] sm:$0xf]
    %v169 = vld [vmem:[#allocation2 + $0x20] sm:$0xf]
    %v170 = vld [vmem:[#allocation2 + $0x24] sm:$0xf]
    %v171 = vld [vmem:[#allocation2 + $0x28] sm:$0xf]
    %v172 = vld [vmem:[#allocation2 + $0x2c] sm:$0xf]
    %v173 = vld [vmem:[#allocation2 + $0x30] sm:$0xf]
    %v174 = vld [vmem:[#allocation2 + $0x34] sm:$0xf]
    %v175 = vld [vmem:[#allocation2 + $0x38] sm:$0xf]
    %v176 = vld [vmem:[#allocation2 + $0x3c] sm:$0xf]
    %v177 = vld [vmem:[#allocation2 + $0x40] sm:$0xf]
    %v178 = vld [vmem:[#allocation2 + $0x44] sm:$0xf]
    %v179 = vld [vmem:[#allocation2 + $0x48] sm:$0xf]
    %v180 = vld [vmem:[#allocation2 + $0x4c] sm:$0xf]
    %v181 = vld [vmem:[#allocation2 + $0x50] sm:$0xf]
    %v182 = vld [vmem:[#allocation2 + $0x54] sm:$0xf]
    %v183 = vld [vmem:[#allocation2 + $0x58] sm:$0xf]
    %v184 = vld [vmem:[#allocation2 + $0x5c] sm:$0xf]
    %v185 = vld [vmem:[#allocation2 + $0x60] sm:$0xf]
    %v186 = vld [vmem:[#allocation2 + $0x64] sm:$0xf]
    %v187 = vld [vmem:[#allocation2 + $0x68] sm:$0xf]
    %v188 = vld [vmem:[#allocation2 + $0x6c] sm:$0xf]
    %v189 = vld [vmem:[#allocation2 + $0x70] sm:$0xf]
    %v190 = vld [vmem:[#allocation2 + $0x74] sm:$0xf]
    %v191 = vld [vmem:[#allocation2 + $0x78] sm:$0xf]
    %v192 = vld [vmem:[#allocation2 + $0x7c] sm:$0xf]
    %v193 = vld [vmem:[#allocation2 + $0x80] sm:$0xf]
    %v194 = vld [vmem:[#allocation2 + $0x84] sm:$0xf]
    %v195 = vld [vmem:[#allocation2 + $0x88] sm:$0xf]
    %v196 = vld [vmem:[#allocation2 + $0x8c] sm:$0xf]
    %v197 = vld [vmem:[#allocation2 + $0x90] sm:$0xf]
    %v198 = vld [vmem:[#allocation2 + $0x94] sm:$0xf]
    %v199 = vld [vmem:[#allocation2 + $0x98] sm:$0xf]
    %v200 = vld [vmem:[#allocation2 + $0x9c] sm:$0xf]
    %v201 = vld [vmem:[#allocation2 + $0xa0] sm:$0xf]
    %v202 = vld [vmem:[#allocation2 + $0xa4] sm:$0xf]
    %v203 = vld [vmem:[#allocation2 + $0xa8] sm:$0xf]
    %v204 = vld [vmem:[#allocation2 + $0xac] sm:$0xf]
    %v205 = vld [vmem:[#allocation2 + $0xb0] sm:$0xf]
    %v206 = vld [vmem:[#allocation2 + $0xb4] sm:$0xf]
    %v207 = vld [vmem:[#allocation2 + $0xb8] sm:$0xf]
    %v208 = vld [vmem:[#allocation2 + $0xbc] sm:$0xf]
    %v257 = vunpack.c.l.b16 %v161
    %v258 = vunpack.c.l.b16 %v162
    %v259 = vunpack.c.l.b16 %v163
    %v260 = vunpack.c.l.b16 %v164
    %v261 = vunpack.c.l.b16 %v165
    %v262 = vunpack.c.l.b16 %v166
    %v263 = vunpack.c.l.b16 %v167
    %v264 = vunpack.c.l.b16 %v168
    %v265 = vunpack.c.l.b16 %v169
    %v266 = vunpack.c.l.b16 %v170
    %v267 = vunpack.c.l.b16 %v171
    %v268 = vunpack.c.l.b16 %v172
    %v269 = vunpack.c.l.b16 %v173
    %v270 = vunpack.c.l.b16 %v174
    %v271 = vunpack.c.l.b16 %v175
    %v272 = vunpack.c.l.b16 %v176
    %v273 = vunpack.c.l.b16 %v177
    %v274 = vunpack.c.l.b16 %v178
    %v275 = vunpack.c.l.b16 %v179
    %v276 = vunpack.c.l.b16 %v180
    %v277 = vunpack.c.l.b16 %v181
    %v278 = vunpack.c.l.b16 %v182
    %v279 = vunpack.c.l.b16 %v183
    %v280 = vunpack.c.l.b16 %v184
    %v281 = vunpack.c.l.b16 %v185
    %v282 = vunpack.c.l.b16 %v186
    %v283 = vunpack.c.l.b16 %v187
    %v284 = vunpack.c.l.b16 %v188
    %v285 = vunpack.c.l.b16 %v189
    %v286 = vunpack.c.l.b16 %v190
    %v287 = vunpack.c.l.b16 %v191
    %v288 = vunpack.c.l.b16 %v192
    %v289 = vunpack.c.l.b16 %v193
    %v290 = vunpack.c.l.b16 %v194
    %v291 = vunpack.c.l.b16 %v195
    %v292 = vunpack.c.l.b16 %v196
    %v293 = vunpack.c.l.b16 %v197
    %v294 = vunpack.c.l.b16 %v198
    %v295 = vunpack.c.l.b16 %v199
    %v296 = vunpack.c.l.b16 %v200
    %v297 = vunpack.c.l.b16 %v201
    %v298 = vunpack.c.l.b16 %v202
    %v299 = vunpack.c.l.b16 %v203
    %v300 = vunpack.c.l.b16 %v204
    %v301 = vunpack.c.l.b16 %v205
    %v302 = vunpack.c.l.b16 %v206
    %v303 = vunpack.c.l.b16 %v207
    %v304 = vunpack.c.l.b16 %v208
    %v305 = vpack.c.b16 %v258, %v257
    %v306 = vpack.c.b16 %v260, %v259
    %v307 = vpack.c.b16 %v262, %v261
    %v308 = vpack.c.b16 %v264, %v263
    %v309 = vpack.c.b16 %v266, %v265
    %v310 = vpack.c.b16 %v268, %v267
    %v311 = vpack.c.b16 %v270, %v269
    %v312 = vpack.c.b16 %v272, %v271
    %v313 = vpack.c.b16 %v274, %v273
    %v314 = vpack.c.b16 %v276, %v275
    %v315 = vpack.c.b16 %v278, %v277
    %v316 = vpack.c.b16 %v280, %v279
    %v317 = vpack.c.b16 %v282, %v281
    %v318 = vpack.c.b16 %v284, %v283
    %v319 = vpack.c.b16 %v286, %v285
    %v320 = vpack.c.b16 %v288, %v287
    %v321 = vpack.c.b16 %v290, %v289
    %v322 = vpack.c.b16 %v292, %v291
    %v323 = vpack.c.b16 %v294, %v293
    %v324 = vpack.c.b16 %v296, %v295
    %v325 = vpack.c.b16 %v298, %v297
    %v326 = vpack.c.b16 %v300, %v299
    %v327 = vpack.c.b16 %v302, %v301
    %v328 = vpack.c.b16 %v304, %v303
    %353 = vmatpush.bf16.msra.mxu0 %v312
    %354 = vmatpush.bf16.msra.mxu0 %v311
    %355 = vmatpush.bf16.msra.mxu0 %v310
    %356 = vmatpush.bf16.msra.mxu0 %v309
    %357 = vmatpush.bf16.msra.mxu0 %v308
    %358 = vmatpush.bf16.msra.mxu0 %v307
    %359 = vmatpush.bf16.msra.mxu0 %v306
    %360 = vmatpush.bf16.msra.mxu0 %v305
    %361 = vmatmul.bf16.gmra.mxu0 %v155
    %v362 = vpop.f32.mrf.mxu0
    %v363 = vadd.f32 0.0, %v362
    %v364 = vpop.f32.mrf.mxu0
    %v365 = vadd.f32 0.0, %v364
    %366 = vmatmul.bf16.gmra.mxu0 %v158
    %v367 = vpop.f32.mrf.mxu0
    %v368 = vadd.f32 0.0, %v367
    %v369 = vpop.f32.mrf.mxu0
    %v370 = vadd.f32 0.0, %v369
    %371 = vdwg.mxu0
    %372 = vmatpush.bf16.msra.mxu0 %v320
    %373 = vmatpush.bf16.msra.mxu0 %v319
    %374 = vmatpush.bf16.msra.mxu0 %v318
    %375 = vmatpush.bf16.msra.mxu0 %v317
    %376 = vmatpush.bf16.msra.mxu0 %v316
    %377 = vmatpush.bf16.msra.mxu0 %v315
    %378 = vmatpush.bf16.msra.mxu0 %v314
    %379 = vmatpush.bf16.msra.mxu0 %v313
    %380 = vmatmul.bf16.gmra.mxu0 %v156
    %v381 = vpop.f32.mrf.mxu0
    %v382 = vadd.f32 %v363, %v381
    %v383 = vpop.f32.mrf.mxu0
    %v384 = vadd.f32 %v365, %v383
    %385 = vmatmul.bf16.gmra.mxu0 %v159
    %v386 = vpop.f32.mrf.mxu0
    %v387 = vadd.f32 %v368, %v386
    %v388 = vpop.f32.mrf.mxu0
    %v389 = vadd.f32 %v370, %v388
    %390 = vdwg.mxu0
    %391 = vmatpush.bf16.msra.mxu0 %v328
    %392 = vmatpush.bf16.msra.mxu0 %v327
    %393 = vmatpush.bf16.msra.mxu0 %v326
    %394 = vmatpush.bf16.msra.mxu0 %v325
    %395 = vmatpush.bf16.msra.mxu0 %v324
    %396 = vmatpush.bf16.msra.mxu0 %v323
    %397 = vmatpush.bf16.msra.mxu0 %v322
    %398 = vmatpush.bf16.msra.mxu0 %v321
    %399 = vmatmul.bf16.gmra.mxu0 %v157
    %v400 = vpop.f32.mrf.mxu0
    %v401 = vadd.f32 %v382, %v400
    %v402 = vpop.f32.mrf.mxu0
    %v403 = vadd.f32 %v384, %v402
    %404 = vmatmul.bf16.gmra.mxu0 %v160
    %v405 = vpop.f32.mrf.mxu0
    %v406 = vadd.f32 %v387, %v405
    %v407 = vpop.f32.mrf.mxu0
    %v408 = vadd.f32 %v389, %v407
    %409 = vdwg.mxu0
    %v410 = vld [vmem:[%s4] sm:$0x1]
    %v411 = vld [vmem:[%s5] sm:$0x1]
    %v412 = vadd.f32 %v401, %v403
    %v413 = vadd.f32 %v412, %v406
    %v414 = vadd.f32 %v413, %v408
    %v415 = vrot.slane %v414, 4
    %v416 = vadd.f32 %v414, %v415
    %v417 = vrot.slane %v416, 2
    %v418 = vadd.f32 %v416, %v417
    %v419 = vrot.slane %v418, 1
    %v420 = vadd.f32 %v418, %v419
    %v421 = vmul.f32 %v401, %v401
    %v422 = vmul.f32 %v403, %v403
    %v423 = vmul.f32 %v406, %v406
    %v424 = vmul.f32 %v408, %v408
    %v425 = vadd.f32 %v421, %v422
    %v426 = vadd.f32 %v425, %v423
    %v427 = vadd.f32 %v426, %v424
    %v428 = vrot.slane %v427, 4
    %v429 = vadd.f32 %v427, %v428
    %v430 = vrot.slane %v429, 2
    %v431 = vadd.f32 %v429, %v430
    %v432 = vrot.slane %v431, 1
    %v433 = vadd.f32 %v431, %v432
    %v434 = vsel %vm81, %v420, %v433
    %435 = vrot.lane.b32.xlu0 %v434, 8
    %v436 = vpop.permute.xlu0 %435
    %v437 = vadd.f32 %v434, %v436
    %438 = vrot.lane.b32.xlu0 %v437, 16
    %v439 = vpop.permute.xlu0 %438
    %v440 = vadd.f32 %v437, %v439
    %441 = vrot.lane.b32.xlu0 %v440, 32
    %v442 = vpop.permute.xlu0 %441
    %v443 = vadd.f32 %v440, %v442
    %444 = vrot.lane.b32.xlu0 %v443, 64
    %v445 = vpop.permute.xlu0 %444
    %v446 = vadd.f32 %v443, %v445
    %v447 = vmul.f32 %v446, 0.001953125
    %v448 = vmul.f32 %v447, %v447
    %v450 = vrot.slane %v448, 7
    %v452 = vsub.f32 %v447, %v450
    %v453 = vmax.f32 %v452, 0.0
    %v454 = vadd.f32 %v453, 1e-05
    %v455 = vrsqrt.pop %v454
    %v456 = vmul.f32 %v455, %v454
    %v457 = vmul.f32 %v456, %v455
    %v458 = vmul.f32 0.5, %v457
    %v459 = vsub.f32 1.5, %v458
    %v460 = vmul.f32 %v455, %v459
    %vm461 = vweird.f32 %v454
    %vm462 = vweird.f32 %v455
    %vm463 = vmor %vm461, %vm462
    %v464 = vsel %vm463, %v455, %v460
    %466 = vst [vmem:[#allocation1] sm:$0xff] %v464
    %s467 = scalar_lea.vmem [#allocation1], 1
    %v468 = vld [vmem:[%s467] ss:$9 sm:$0xff]
    %v470 = vmul.f32 %v410, %v468
    %v471 = vmul.f32 %v447, %v470
    %v472 = vsub.f32 %v411, %v471
    %v474 = vperm.slane %v470, 0
    %v476 = vmul.f32 %v401, %v474
    %v477 = vmul.f32 %v403, %v474
    %v478 = vmul.f32 %v406, %v474
    %v479 = vmul.f32 %v408, %v474
    %v481 = vperm.slane %v472, 0
    %v483 = vadd.f32 %v476, %v481
    %v484 = vadd.f32 %v477, %v481
    %v485 = vadd.f32 %v478, %v481
    %v486 = vadd.f32 %v479, %v481
    %v487 = vmax.f32 %v483, 0.0
    %v488 = vmax.f32 %v484, 0.0
    %v489 = vmax.f32 %v485, 0.0
    %v490 = vmax.f32 %v486, 0.0
    %v495 = vrot.slane %v487, 7
    %v496 = vrot.slane %v488, 7
    %v497 = vsel %vm81, %v495, %v496
    %v498 = vrot.slane %v489, 7
    %v499 = vsel %vm81, %v496, %v498
    %v500 = vrot.slane %v490, 7
    %v501 = vsel %vm81, %v498, %v500
    %v506 = vsel %vm81, 0.0, %v495
    %v507 = vmul.f32 %v506, %v97
    %v508 = vmul.f32 %v497, %v102
    %v509 = vmul.f32 %v499, %v107
    %v510 = vmul.f32 %v501, %v112
    %v511 = vrot.slane %v487, 1
    %v512 = vrot.slane %v488, 1
    %v513 = vsel %vm118, %v511, %v512
    %v514 = vrot.slane %v489, 1
    %v515 = vsel %vm118, %v512, %v514
    %v516 = vrot.slane %v490, 1
    %v517 = vsel %vm118, %v514, %v516
    %v522 = vsel %vm118, %v516, 0.0
    %v523 = vmul.f32 %v513, %v134
    %v524 = vmul.f32 %v515, %v139
    %v525 = vmul.f32 %v517, %v144
    %v526 = vmul.f32 %v522, %v149
    %v527 = vpack.c.bf16 %v508, %v507
    %v528 = vpack.c.bf16 %v488, %v487
    %v529 = vpack.c.bf16 %v524, %v523
    %v530 = vpack.c.bf16 %v510, %v509
    %v531 = vpack.c.bf16 %v490, %v489
    %v532 = vpack.c.bf16 %v526, %v525
    %v533 = vld [vmem:[#allocation5] sm:$0xf]
    %v534 = vld [vmem:[#allocation5 + $0x4] sm:$0xf]
    %v535 = vld [vmem:[#allocation5 + $0x8] sm:$0xf]
    %v536 = vld [vmem:[#allocation5 + $0xc] sm:$0xf]
    %v537 = vld [vmem:[#allocation5 + $0x10] sm:$0xf]
    %v538 = vld [vmem:[#allocation5 + $0x14] sm:$0xf]
    %v539 = vld [vmem:[#allocation5 + $0x18] sm:$0xf]
    %v540 = vld [vmem:[#allocation5 + $0x1c] sm:$0xf]
    %v541 = vld [vmem:[#allocation5 + $0x20] sm:$0xf]
    %v542 = vld [vmem:[#allocation5 + $0x24] sm:$0xf]
    %v543 = vld [vmem:[#allocation5 + $0x28] sm:$0xf]
    %v544 = vld [vmem:[#allocation5 + $0x2c] sm:$0xf]
    %v545 = vld [vmem:[#allocation5 + $0x30] sm:$0xf]
    %v546 = vld [vmem:[#allocation5 + $0x34] sm:$0xf]
    %v547 = vld [vmem:[#allocation5 + $0x38] sm:$0xf]
    %v548 = vld [vmem:[#allocation5 + $0x3c] sm:$0xf]
    %v549 = vld [vmem:[#allocation5 + $0x40] sm:$0xf]
    %v550 = vld [vmem:[#allocation5 + $0x44] sm:$0xf]
    %v551 = vld [vmem:[#allocation5 + $0x48] sm:$0xf]
    %v552 = vld [vmem:[#allocation5 + $0x4c] sm:$0xf]
    %v553 = vld [vmem:[#allocation5 + $0x50] sm:$0xf]
    %v554 = vld [vmem:[#allocation5 + $0x54] sm:$0xf]
    %v555 = vld [vmem:[#allocation5 + $0x58] sm:$0xf]
    %v556 = vld [vmem:[#allocation5 + $0x5c] sm:$0xf]
    %v557 = vld [vmem:[#allocation5 + $0x60] sm:$0xf]
    %v558 = vld [vmem:[#allocation5 + $0x64] sm:$0xf]
    %v559 = vld [vmem:[#allocation5 + $0x68] sm:$0xf]
    %v560 = vld [vmem:[#allocation5 + $0x6c] sm:$0xf]
    %v561 = vld [vmem:[#allocation5 + $0x70] sm:$0xf]
    %v562 = vld [vmem:[#allocation5 + $0x74] sm:$0xf]
    %v563 = vld [vmem:[#allocation5 + $0x78] sm:$0xf]
    %v564 = vld [vmem:[#allocation5 + $0x7c] sm:$0xf]
    %v565 = vld [vmem:[#allocation5 + $0x80] sm:$0xf]
    %v566 = vld [vmem:[#allocation5 + $0x84] sm:$0xf]
    %v567 = vld [vmem:[#allocation5 + $0x88] sm:$0xf]
    %v568 = vld [vmem:[#allocation5 + $0x8c] sm:$0xf]
    %v569 = vld [vmem:[#allocation5 + $0x90] sm:$0xf]
    %v570 = vld [vmem:[#allocation5 + $0x94] sm:$0xf]
    %v571 = vld [vmem:[#allocation5 + $0x98] sm:$0xf]
    %v572 = vld [vmem:[#allocation5 + $0x9c] sm:$0xf]
    %v573 = vld [vmem:[#allocation5 + $0xa0] sm:$0xf]
    %v574 = vld [vmem:[#allocation5 + $0xa4] sm:$0xf]
    %v575 = vld [vmem:[#allocation5 + $0xa8] sm:$0xf]
    %v576 = vld [vmem:[#allocation5 + $0xac] sm:$0xf]
    %v577 = vld [vmem:[#allocation5 + $0xb0] sm:$0xf]
    %v578 = vld [vmem:[#allocation5 + $0xb4] sm:$0xf]
    %v579 = vld [vmem:[#allocation5 + $0xb8] sm:$0xf]
    %v580 = vld [vmem:[#allocation5 + $0xbc] sm:$0xf]
    %v629 = vunpack.c.l.b16 %v533
    %v630 = vunpack.c.l.b16 %v534
    %v631 = vunpack.c.l.b16 %v535
    %v632 = vunpack.c.l.b16 %v536
    %v633 = vunpack.c.l.b16 %v537
    %v634 = vunpack.c.l.b16 %v538
    %v635 = vunpack.c.l.b16 %v539
    %v636 = vunpack.c.l.b16 %v540
    %v637 = vunpack.c.l.b16 %v541
    %v638 = vunpack.c.l.b16 %v542
    %v639 = vunpack.c.l.b16 %v543
    %v640 = vunpack.c.l.b16 %v544
    %v641 = vunpack.c.l.b16 %v545
    %v642 = vunpack.c.l.b16 %v546
    %v643 = vunpack.c.l.b16 %v547
    %v644 = vunpack.c.l.b16 %v548
    %v645 = vunpack.c.l.b16 %v549
    %v646 = vunpack.c.l.b16 %v550
    %v647 = vunpack.c.l.b16 %v551
    %v648 = vunpack.c.l.b16 %v552
    %v649 = vunpack.c.l.b16 %v553
    %v650 = vunpack.c.l.b16 %v554
    %v651 = vunpack.c.l.b16 %v555
    %v652 = vunpack.c.l.b16 %v556
    %v653 = vunpack.c.l.b16 %v557
    %v654 = vunpack.c.l.b16 %v558
    %v655 = vunpack.c.l.b16 %v559
    %v656 = vunpack.c.l.b16 %v560
    %v657 = vunpack.c.l.b16 %v561
    %v658 = vunpack.c.l.b16 %v562
    %v659 = vunpack.c.l.b16 %v563
    %v660 = vunpack.c.l.b16 %v564
    %v661 = vunpack.c.l.b16 %v565
    %v662 = vunpack.c.l.b16 %v566
    %v663 = vunpack.c.l.b16 %v567
    %v664 = vunpack.c.l.b16 %v568
    %v665 = vunpack.c.l.b16 %v569
    %v666 = vunpack.c.l.b16 %v570
    %v667 = vunpack.c.l.b16 %v571
    %v668 = vunpack.c.l.b16 %v572
    %v669 = vunpack.c.l.b16 %v573
    %v670 = vunpack.c.l.b16 %v574
    %v671 = vunpack.c.l.b16 %v575
    %v672 = vunpack.c.l.b16 %v576
    %v673 = vunpack.c.l.b16 %v577
    %v674 = vunpack.c.l.b16 %v578
    %v675 = vunpack.c.l.b16 %v579
    %v676 = vunpack.c.l.b16 %v580
    %v677 = vpack.c.b16 %v630, %v629
    %v678 = vpack.c.b16 %v632, %v631
    %v679 = vpack.c.b16 %v634, %v633
    %v680 = vpack.c.b16 %v636, %v635
    %v681 = vpack.c.b16 %v638, %v637
    %v682 = vpack.c.b16 %v640, %v639
    %v683 = vpack.c.b16 %v642, %v641
    %v684 = vpack.c.b16 %v644, %v643
    %v685 = vpack.c.b16 %v646, %v645
    %v686 = vpack.c.b16 %v648, %v647
    %v687 = vpack.c.b16 %v650, %v649
    %v688 = vpack.c.b16 %v652, %v651
    %v689 = vpack.c.b16 %v654, %v653
    %v690 = vpack.c.b16 %v656, %v655
    %v691 = vpack.c.b16 %v658, %v657
    %v692 = vpack.c.b16 %v660, %v659
    %v693 = vpack.c.b16 %v662, %v661
    %v694 = vpack.c.b16 %v664, %v663
    %v695 = vpack.c.b16 %v666, %v665
    %v696 = vpack.c.b16 %v668, %v667
    %v697 = vpack.c.b16 %v670, %v669
    %v698 = vpack.c.b16 %v672, %v671
    %v699 = vpack.c.b16 %v674, %v673
    %v700 = vpack.c.b16 %v676, %v675
    %725 = vmatpush.bf16.msra.mxu0 %v684
    %726 = vmatpush.bf16.msra.mxu0 %v683
    %727 = vmatpush.bf16.msra.mxu0 %v682
    %728 = vmatpush.bf16.msra.mxu0 %v681
    %729 = vmatpush.bf16.msra.mxu0 %v680
    %730 = vmatpush.bf16.msra.mxu0 %v679
    %731 = vmatpush.bf16.msra.mxu0 %v678
    %732 = vmatpush.bf16.msra.mxu0 %v677
    %733 = vmatmul.bf16.gmra.mxu0 %v527
    %v734 = vpop.f32.mrf.mxu0
    %v735 = vadd.f32 0.0, %v734
    %v736 = vpop.f32.mrf.mxu0
    %v737 = vadd.f32 0.0, %v736
    %738 = vmatmul.bf16.gmra.mxu0 %v530
    %v739 = vpop.f32.mrf.mxu0
    %v740 = vadd.f32 0.0, %v739
    %v741 = vpop.f32.mrf.mxu0
    %v742 = vadd.f32 0.0, %v741
    %743 = vdwg.mxu0
    %744 = vmatpush.bf16.msra.mxu0 %v692
    %745 = vmatpush.bf16.msra.mxu0 %v691
    %746 = vmatpush.bf16.msra.mxu0 %v690
    %747 = vmatpush.bf16.msra.mxu0 %v689
    %748 = vmatpush.bf16.msra.mxu0 %v688
    %749 = vmatpush.bf16.msra.mxu0 %v687
    %750 = vmatpush.bf16.msra.mxu0 %v686
    %751 = vmatpush.bf16.msra.mxu0 %v685
    %752 = vmatmul.bf16.gmra.mxu0 %v528
    %v753 = vpop.f32.mrf.mxu0
    %v754 = vadd.f32 %v735, %v753
    %v755 = vpop.f32.mrf.mxu0
    %v756 = vadd.f32 %v737, %v755
    %757 = vmatmul.bf16.gmra.mxu0 %v531
    %v758 = vpop.f32.mrf.mxu0
    %v759 = vadd.f32 %v740, %v758
    %v760 = vpop.f32.mrf.mxu0
    %v761 = vadd.f32 %v742, %v760
    %762 = vdwg.mxu0
    %763 = vmatpush.bf16.msra.mxu0 %v700
    %764 = vmatpush.bf16.msra.mxu0 %v699
    %765 = vmatpush.bf16.msra.mxu0 %v698
    %766 = vmatpush.bf16.msra.mxu0 %v697
    %767 = vmatpush.bf16.msra.mxu0 %v696
    %768 = vmatpush.bf16.msra.mxu0 %v695
    %769 = vmatpush.bf16.msra.mxu0 %v694
    %770 = vmatpush.bf16.msra.mxu0 %v693
    %771 = vmatmul.bf16.gmra.mxu0 %v529
    %v772 = vpop.f32.mrf.mxu0
    %v773 = vadd.f32 %v754, %v772
    %v774 = vpop.f32.mrf.mxu0
    %v775 = vadd.f32 %v756, %v774
    %776 = vmatmul.bf16.gmra.mxu0 %v532
    %v777 = vpop.f32.mrf.mxu0
    %v778 = vadd.f32 %v759, %v777
    %v779 = vpop.f32.mrf.mxu0
    %v780 = vadd.f32 %v761, %v779
    %781 = vdwg.mxu0
    %v782 = vld [vmem:[%s7] sm:$0x1]
    %v783 = vld [vmem:[%s8] sm:$0x1]
    %v784 = vadd.f32 %v773, %v775
    %v785 = vadd.f32 %v784, %v778
    %v786 = vadd.f32 %v785, %v780
    %v787 = vrot.slane %v786, 4
    %v788 = vadd.f32 %v786, %v787
    %v789 = vrot.slane %v788, 2
    %v790 = vadd.f32 %v788, %v789
    %v791 = vrot.slane %v790, 1
    %v792 = vadd.f32 %v790, %v791
    %v793 = vmul.f32 %v773, %v773
    %v794 = vmul.f32 %v775, %v775
    %v795 = vmul.f32 %v778, %v778
    %v796 = vmul.f32 %v780, %v780
    %v797 = vadd.f32 %v793, %v794
    %v798 = vadd.f32 %v797, %v795
    %v799 = vadd.f32 %v798, %v796
    %v800 = vrot.slane %v799, 4
    %v801 = vadd.f32 %v799, %v800
    %v802 = vrot.slane %v801, 2
    %v803 = vadd.f32 %v801, %v802
    %v804 = vrot.slane %v803, 1
    %v805 = vadd.f32 %v803, %v804
    %v806 = vsel %vm81, %v792, %v805
    %807 = vrot.lane.b32.xlu0 %v806, 8
    %v808 = vpop.permute.xlu0 %807
    %v809 = vadd.f32 %v806, %v808
    %810 = vrot.lane.b32.xlu0 %v809, 16
    %v811 = vpop.permute.xlu0 %810
    %v812 = vadd.f32 %v809, %v811
    %813 = vrot.lane.b32.xlu0 %v812, 32
    %v814 = vpop.permute.xlu0 %813
    %v815 = vadd.f32 %v812, %v814
    %816 = vrot.lane.b32.xlu0 %v815, 64
    %v817 = vpop.permute.xlu0 %816
    %v818 = vadd.f32 %v815, %v817
    %v819 = vmul.f32 %v818, 0.001953125
    %v820 = vmul.f32 %v819, %v819
    %v822 = vrot.slane %v820, 7
    %v824 = vsub.f32 %v819, %v822
    %v825 = vmax.f32 %v824, 0.0
    %v826 = vadd.f32 %v825, 1e-05
    %v827 = vrsqrt.pop %v826
    %v828 = vmul.f32 %v827, %v826
    %v829 = vmul.f32 %v828, %v827
    %v830 = vmul.f32 0.5, %v829
    %v831 = vsub.f32 1.5, %v830
    %v832 = vmul.f32 %v827, %v831
    %vm833 = vweird.f32 %v826
    %vm834 = vweird.f32 %v827
    %vm835 = vmor %vm833, %vm834
    %v836 = vsel %vm835, %v827, %v832
    %838 = vst [vmem:[#allocation1] sm:$0xff] %v836
    %s839 = scalar_lea.vmem [#allocation1], 1
    %v840 = vld [vmem:[%s839] ss:$9 sm:$0xff]
    %v842 = vmul.f32 %v782, %v840
    %v843 = vmul.f32 %v819, %v842
    %v844 = vsub.f32 %v783, %v843
    %v846 = vperm.slane %v842, 0
    %v848 = vmul.f32 %v773, %v846
    %v849 = vmul.f32 %v775, %v846
    %v850 = vmul.f32 %v778, %v846
    %v851 = vmul.f32 %v780, %v846
    %v853 = vperm.slane %v844, 0
    %v855 = vadd.f32 %v848, %v853
    %v856 = vadd.f32 %v849, %v853
    %v857 = vadd.f32 %v850, %v853
    %v858 = vadd.f32 %v851, %v853
    %v859 = vadd.f32 %v855, %v73
    %v860 = vadd.f32 %v856, %v74
    %v861 = vadd.f32 %v857, %v75
    %v862 = vadd.f32 %v858, %v76
    %v863 = vmax.f32 %v859, 0.0
    %v864 = vmax.f32 %v860, 0.0
    %v865 = vmax.f32 %v861, 0.0
    %v866 = vmax.f32 %v862, 0.0
    %867 = vst [vmem:[#allocation7] sm:$0xff] %v863
    %868 = vst [vmem:[#allocation7 + $0x8] sm:$0xff] %v864
    %869 = vst [vmem:[#allocation7 + $0x10] sm:$0xff] %v865
    %870 = vst [vmem:[#allocation7 + $0x18] sm:$0xff] %v866
    // Predicated region
    $region46: #{basic_block_apply.1} parent=1 // pred_check
      _
    $region47: #{basic_block_apply.1} parent=1 // pred_check_branch
      %872 = sbr.rel (0) target = $region49
    $region48: #{basic_block_apply.1} parent=1 // pred_region
      %874 = vsyncadd [#allocation4], 0
      %s875 = sshll.u32 [#allocation7], 4
      %s876 = int_to_ptr.vmem [resolvable:$true] %s875
      %s877 = sshll.u32 %s9, 4
      %s878 = int_to_ptr.hbm [resolvable:$true] %s877
      %883 = dma.vmem_to_hbm [thread:$0]  %s876, 512, %s878, [#allocation4], 128, 128, 8
    $region49: #{basic_block_apply.1} parent=1 // pred_fallthru
      _
    // Predicated region
    $region50: #{basic_block_apply.1} parent=1 // pred_check
      _
    $region51: #{basic_block_apply.1} parent=1 // pred_check_branch
      %885 = sbr.rel (0) target = $region53
    $region52: #{basic_block_apply.1} parent=1 // pred_region
      %887 = dma.done [#allocation4], 512
    $region53: #{basic_block_apply.1} parent=1 // pred_fallthru
      _
    %888 = vsyncpa [#allocation3], 1
    %889 = vsyncpa [#allocation6], 1
    %890 = vsyncpa [#allocation4], 1

</llo_original>
